<compile_context>
chip_gen: v7x
topology: tpu7x:2x2x1
jax: 0.10.0
libtpu: 0.0.40
codegen_flags: <defaults>
</compile_context>

<pallas_src>
import functools

import jax
import jax.numpy as jnp
from jax.experimental import pallas as pl
from jax.experimental.pallas import tpu as pltpu

# Synthetic model dimensions (module-level globals in the original script).
M, N, P, K = 4, 8, 4, 32
BATCH = 2

G = 8  # batch rows packed per lane-dense super-row (one sublane group)


def prep_weights(w11, w12, w3, dtype=jnp.bfloat16):
    """One-time weight prep (analogue of nn.Module.__init__).

    nn.Linear weights: w11 (K, M*N), w12 (K, N*P), w3 (M*P, K).
    Returns block-diagonal super-row weights:
      w11_big (G*M*N, G*K), w12_big (G*N*P, G*K), w3_big (G*K, G*M*P)
    so that packing G batch rows along lanes turns the three per-row
    matmuls into three lane-dense matmuls with no per-call transposes.
    """
    eye = jnp.eye(G, dtype=jnp.float32)
    w11_big = jnp.kron(eye, w11.T.astype(jnp.float32)).astype(dtype)
    w12_big = jnp.kron(eye, w12.T.astype(jnp.float32)).astype(dtype)
    w3_big = jnp.kron(eye, w3.T.astype(jnp.float32)).astype(dtype)
    return w11_big, w12_big, w3_big


def matmul_fedro_kernel(a_ref, b_ref, w11_ref, w12_ref, w3_ref, out_ref):
    # a_ref: (TS, G*M*N) bf16    w11_ref: (G*M*N, G*K) bf16
    # b_ref: (TS, G*N*P) bf16    w12_ref: (G*N*P, G*K) bf16
    # out_ref: (TS, G*M*P) f32   w3_ref : (G*K, G*M*P) bf16
    h1 = jnp.dot(a_ref[...], w11_ref[...], preferred_element_type=jnp.float32)
    h2 = jnp.dot(b_ref[...], w12_ref[...], preferred_element_type=jnp.float32)
    # Elementwise gate rides in otherwise-idle VALU slots under MXU work.
    gate = (h1 * h2).astype(w3_ref.dtype)
    out_ref[...] = jnp.dot(
        gate, w3_ref[...], preferred_element_type=jnp.float32
    ).astype(out_ref.dtype)


@functools.partial(jax.jit, static_argnames=("tile_super_rows",))
def matmul_fedro_forward(a, b, w11_big, w12_big, w3_big, *, tile_super_rows=512):
    """a: (..., M, N) or (B, M*N); b: (..., N, P) or (B, N*P). Returns (B, M*P) f32."""
    mn, np_, mp = M * N, N * P, M * P

    a2 = a.reshape(-1, mn).astype(jnp.bfloat16)
    b2 = b.reshape(-1, np_).astype(jnp.bfloat16)
    bsz = a2.shape[0]

    # Batch tiling in units of super-rows (each = G batch rows).
    s_rows = pl.cdiv(bsz, G)
    ts = min(tile_super_rows, pl.next_power_of_2(s_rows))
    ts = max(8, (ts // 8) * 8)                 # keep sublane-aligned tiles
    s_pad = pl.cdiv(s_rows, ts) * ts
    b_pad = s_pad * G

    if b_pad != bsz:
        pad = b_pad - bsz
        a2 = jnp.pad(a2, ((0, pad), (0, 0)))
        b2 = jnp.pad(b2, ((0, pad), (0, 0)))

    # Free row-major reshapes: pack G batch rows per super-row (lane-dense).
    a_sup = a2.reshape(s_pad, G * mn)          # (s_pad, 256)
    b_sup = b2.reshape(s_pad, G * np_)         # (s_pad, 256)

    out_sup = pl.pallas_call(
        matmul_fedro_kernel,
        out_shape=jax.ShapeDtypeStruct((s_pad, G * mp), jnp.float32),
        grid=(s_pad // ts,),
        in_specs=[
            pl.BlockSpec((ts, G * mn), lambda i: (i, 0)),
            pl.BlockSpec((ts, G * np_), lambda i: (i, 0)),
            # Grid-invariant weights: fetched once, stay VMEM-resident.
            pl.BlockSpec((G * mn, G * K), lambda i: (0, 0)),
            pl.BlockSpec((G * np_, G * K), lambda i: (0, 0)),
            pl.BlockSpec((G * K, G * mp), lambda i: (0, 0)),
        ],
        out_specs=pl.BlockSpec((ts, G * mp), lambda i: (i, 0)),
        compiler_params=pltpu.CompilerParams(
            dimension_semantics=("parallel",),   # v7x: shard batch over 2 TCs
        ),
    )(a_sup, b_sup, w11_big, w12_big, w3_big)

    # Free reshape back to per-row layout; drop batch padding.
    return out_sup.reshape(b_pad, mp)[:bsz]


if __name__ == "__main__":
    key = jax.random.PRNGKey(0)
    k_a, k_b, k_w11, k_w12, k_w3 = jax.random.split(key, 5)

    # Inputs shaped like the un-flattened operands of a batched matmul.
    a = jax.random.normal(k_a, (BATCH, M, N), dtype=jnp.float32)
    b = jax.random.normal(k_b, (BATCH, N, P), dtype=jnp.float32)

    # Deterministic synthetic parameters (nn.Linear weight shapes, no bias).
    w11 = jax.random.normal(k_w11, (K, M * N), dtype=jnp.float32) * 0.05
    w12 = jax.random.normal(k_w12, (K, N * P), dtype=jnp.float32) * 0.05
    w3 = jax.random.normal(k_w3, (M * P, K), dtype=jnp.float32) * 0.05

    # Weight prep happens once (module init), not on every forward call.
    w11_big, w12_big, w3_big = prep_weights(w11, w12, w3)

    out = matmul_fedro_forward(a, b, w11_big, w12_big, w3_big, tile_super_rows=512)
    out = jax.block_until_ready(out)
    assert out.shape == (BATCH, M * P)

    # References.
    def ref_fp32(a2, b2):
        return ((a2 @ w11.T) * (b2 @ w12.T)) @ w3.T

    def ref_bf16(a2, b2):  # emulates the kernel's bf16 rounding points
        bf = lambda x: x.astype(jnp.bfloat16).astype(jnp.float32)
        h1 = bf(a2) @ bf(w11.T)
        h2 = bf(b2) @ bf(w12.T)
        return bf(h1 * h2) @ bf(w3.T)

    a2 = a.reshape(-1, M * N)
    b2 = b.reshape(-1, N * P)
    # Tight check vs. bf16-emulating reference; loose check vs. f32 semantics
    # (tolerance widened because operands are fed to the MXU in bf16).
    assert jnp.allclose(out, ref_bf16(a2, b2), atol=1e-3, rtol=1e-2)
    assert jnp.allclose(out, ref_fp32(a2, b2), atol=1e-2, rtol=1e-2)

    # Exercise the multi-step grid + batch-padding path with a larger batch.
    k_a2, k_b2 = jax.random.split(jax.random.PRNGKey(1))
    bsz2 = 100
    a_big = jax.random.normal(k_a2, (bsz2, M, N), dtype=jnp.float32)
    b_big = jax.random.normal(k_b2, (bsz2, N, P), dtype=jnp.float32)
    out_big = matmul_fedro_forward(
        a_big, b_big, w11_big, w12_big, w3_big, tile_super_rows=8
    )
    out_big = jax.block_until_ready(out_big)
    a2b = a_big.reshape(-1, M * N)
    b2b = b_big.reshape(-1, N * P)
    assert out_big.shape == (bsz2, M * P)
    assert jnp.allclose(out_big, ref_bf16(a2b, b2b), atol=1e-3, rtol=1e-2)
    assert jnp.allclose(out_big, ref_fp32(a2b, b2b), atol=1e-2, rtol=1e-2)

    print("KERNEL_OK")
</pallas_src>

<mosaic_0001>
module attributes {stable_mosaic.version = 11 : i64} {
  func.func @matmul_fedro_kernel(%arg0: i32, %arg1: memref<8x256xbf16, #tpu.memory_space<vmem>>, %arg2: memref<8x256xbf16, #tpu.memory_space<vmem>>, %arg3: memref<256x256xbf16, #tpu.memory_space<vmem>>, %arg4: memref<256x256xbf16, #tpu.memory_space<vmem>>, %arg5: memref<256x128xbf16, #tpu.memory_space<vmem>>, %arg6: memref<8x128xf32, #tpu.memory_space<vmem>>) attributes {dimension_semantics = [#tpu.dimension_semantics<parallel>], iteration_bounds = array<i64: 1>, scalar_prefetch = 0 : i64, scratch_operands = 0 : i64, tpu.core_type = #tpu.core_type<tc>, window_params = [{transform_indices = @transform_0, window_bounds = array<i64: 8, 256>}, {transform_indices = @transform_1, window_bounds = array<i64: 8, 256>}, {pipeline_mode = #tpu.pipeline_mode<synchronous>, transform_indices = @transform_2, window_bounds = array<i64: 256, 256>}, {pipeline_mode = #tpu.pipeline_mode<synchronous>, transform_indices = @transform_3, window_bounds = array<i64: 256, 256>}, {pipeline_mode = #tpu.pipeline_mode<synchronous>, transform_indices = @transform_4, window_bounds = array<i64: 256, 128>}, {transform_indices = @transform_5, window_bounds = array<i64: 8, 128>}]} {
    %c0 = arith.constant 0 : index
    %c0_0 = arith.constant 0 : index
    %0 = vector.load %arg1[%c0, %c0_0] : memref<8x256xbf16, #tpu.memory_space<vmem>>, vector<8x256xbf16>
    %c0_1 = arith.constant 0 : index
    %c0_2 = arith.constant 0 : index
    %1 = vector.load %arg3[%c0_1, %c0_2] : memref<256x256xbf16, #tpu.memory_space<vmem>>, vector<256x256xbf16>
    %cst = arith.constant dense<0.000000e+00> : vector<8x256xf32>
    %2 = tpu.matmul %0, %1, %cst {dimension_numbers = #tpu.dot_dimension_numbers<[1], [0], [0], [1], [0, 0, 1, 1], [], []>} : vector<8x256xbf16>, vector<256x256xbf16>, vector<8x256xf32> -> vector<8x256xf32>
    %c0_3 = arith.constant 0 : index
    %c0_4 = arith.constant 0 : index
    %3 = vector.load %arg2[%c0_3, %c0_4] : memref<8x256xbf16, #tpu.memory_space<vmem>>, vector<8x256xbf16>
    %c0_5 = arith.constant 0 : index
    %c0_6 = arith.constant 0 : index
    %4 = vector.load %arg4[%c0_5, %c0_6] : memref<256x256xbf16, #tpu.memory_space<vmem>>, vector<256x256xbf16>
    %cst_7 = arith.constant dense<0.000000e+00> : vector<8x256xf32>
    %5 = tpu.matmul %3, %4, %cst_7 {dimension_numbers = #tpu.dot_dimension_numbers<[1], [0], [0], [1], [0, 0, 1, 1], [], []>} : vector<8x256xbf16>, vector<256x256xbf16>, vector<8x256xf32> -> vector<8x256xf32>
    %6 = arith.mulf %2, %5 : vector<8x256xf32>
    %7 = arith.truncf %6 : vector<8x256xf32> to vector<8x256xbf16>
    %c0_8 = arith.constant 0 : index
    %c0_9 = arith.constant 0 : index
    %8 = vector.load %arg5[%c0_8, %c0_9] : memref<256x128xbf16, #tpu.memory_space<vmem>>, vector<256x128xbf16>
    %cst_10 = arith.constant dense<0.000000e+00> : vector<8x128xf32>
    %9 = tpu.matmul %7, %8, %cst_10 {dimension_numbers = #tpu.dot_dimension_numbers<[1], [0], [0], [1], [0, 0, 1, 1], [], []>} : vector<8x256xbf16>, vector<256x128xbf16>, vector<8x128xf32> -> vector<8x128xf32>
    %c0_11 = arith.constant 0 : index
    %c0_12 = arith.constant 0 : index
    %10 = vector.load %arg6[%c0_11, %c0_12] : memref<8x128xf32, #tpu.memory_space<vmem>>, vector<8x128xf32>
    tpu.vector_store %arg6[%c0_11, %c0_12], %9 {strides = array<i32>} : memref<8x128xf32, #tpu.memory_space<vmem>>, vector<8x128xf32>,
    return
  }
  func.func @transform_0(%arg0: i32) -> (i32, i32) {
    %c0_i32 = arith.constant 0 : i32
    %c0_i32_0 = arith.constant 0 : i32
    return %arg0, %c0_i32 : i32, i32
  }
  func.func @transform_1(%arg0: i32) -> (i32, i32) {
    %c0_i32 = arith.constant 0 : i32
    %c0_i32_0 = arith.constant 0 : i32
    return %arg0, %c0_i32 : i32, i32
  }
  func.func @transform_2(%arg0: i32) -> (i32, i32) {
    %c0_i32 = arith.constant 0 : i32
    %c0_i32_0 = arith.constant 0 : i32
    %c0_i32_1 = arith.constant 0 : i32
    return %c0_i32, %c0_i32_0 : i32, i32
  }
  func.func @transform_3(%arg0: i32) -> (i32, i32) {
    %c0_i32 = arith.constant 0 : i32
    %c0_i32_0 = arith.constant 0 : i32
    %c0_i32_1 = arith.constant 0 : i32
    return %c0_i32, %c0_i32_0 : i32, i32
  }
  func.func @transform_4(%arg0: i32) -> (i32, i32) {
    %c0_i32 = arith.constant 0 : i32
    %c0_i32_0 = arith.constant 0 : i32
    %c0_i32_1 = arith.constant 0 : i32
    return %c0_i32, %c0_i32_0 : i32, i32
  }
  func.func @transform_5(%arg0: i32) -> (i32, i32) {
    %c0_i32 = arith.constant 0 : i32
    %c0_i32_0 = arith.constant 0 : i32
    return %arg0, %c0_i32 : i32, i32
  }
}

</mosaic_0001>

<llo_original>
// kernel: matmul_fedro_forward.1
$region0: #{matmul_fedro_forward.1}
  #allocation0 [shape = 'u32[]', space=smem, size = 0x4, offset = 0x4, fixed_abs, tag = 'smem constant byte address 0x4 - core index']
  #allocation1 [shape = 'u32[144,128]{1,0:T(1,128)}', space=vmem, size = 0x12000, scoped, tag = 'internal scratch']
  %s0 = inlined_call_operand.vmem [shape: bf16[8,256], index: 0, kind: input, shape index: {}]
  %s1 = inlined_call_operand.vmem [shape: bf16[8,256], index: 1, kind: input, shape index: {}]
  %s2 = inlined_call_operand.hbm [shape: bf16[256,256], index: 2, kind: input, shape index: {}]
  %s3 = inlined_call_operand.hbm [shape: bf16[256,256], index: 3, kind: input, shape index: {}]
  %s4 = inlined_call_operand.vmem [shape: bf16[256,128], index: 4, kind: input, shape index: {}]
  %s5 = inlined_call_operand.vmem [shape: f32[8,128], index: 5, kind: output, shape index: {}]
  %s6 = sld [smem:[#allocation0]]
  $region38: #{matmul_fedro_forward.1} parent=0
    _
  %s8 = ssub.s32 1, %s6
  %s9 = scalar_select 0, %s8, %s6
  $region1: #{matmul_fedro_forward.1} parent=0
    #allocation2 [shape = 'u8[131072]{0}', space=vmem, size = 0x20000, scoped, tag = 'input window, operand 2, single buffered']
    #allocation3 [shape = 's32[1]{0}', space=sflag, size = 0x4, scoped, tag = 'scoped memory for matmul_fedro_forward.1']
    #allocation4 [shape = 'u8[131072]{0}', space=vmem, size = 0x20000, scoped, tag = 'input window, operand 3, single buffered']
    #allocation5 [shape = 's32[1]{0}', space=sflag, size = 0x4, scoped, tag = 'scoped memory for matmul_fedro_forward.1']
    %10 = vsyncpa [#allocation3], 0
    %11 = vsyncpa [#allocation5], 0
    // Predicated region
    $region2: #{matmul_fedro_forward.1} parent=1 // pred_check
      _
    $region3: #{matmul_fedro_forward.1} parent=1 // pred_check_branch
      %13 = sbr.rel (0) target = $region5
    $region4: #{matmul_fedro_forward.1} parent=1 // pred_region
      _
    $region5: #{matmul_fedro_forward.1} parent=1 // pred_fallthru
      _
    // Predicated region
    $region6: #{matmul_fedro_forward.1} parent=1 // pred_check
      _
    $region7: #{matmul_fedro_forward.1} parent=1 // pred_check_branch
      %15 = sbr.rel (0) target = $region9
    $region8: #{matmul_fedro_forward.1} parent=1 // pred_region
      _
    $region9: #{matmul_fedro_forward.1} parent=1 // pred_fallthru
      _
    // Predicated region
    $region10: #{matmul_fedro_forward.1} parent=1 // pred_check
      _
    $region11: #{matmul_fedro_forward.1} parent=1 // pred_check_branch
      %17 = sbr.rel (0) target = $region13
    $region12: #{matmul_fedro_forward.1} parent=1 // pred_region
      %s19 = ssub.s32 4096, 4096
      %20 = vsyncadd [#allocation3], %s19
      %s21 = sshll.u32 [#allocation2], 4
      %s22 = int_to_ptr.vmem [resolvable:$true] %s21
      %27 = dma.hbm_to_vmem [thread:$0]  %s2, 4096, %s22, [#allocation3], 128, 128, 8
    $region13: #{matmul_fedro_forward.1} parent=1 // pred_fallthru
      _
    // Predicated region
    $region14: #{matmul_fedro_forward.1} parent=1 // pred_check
      _
    $region15: #{matmul_fedro_forward.1} parent=1 // pred_check_branch
      %29 = sbr.rel (0) target = $region17
    $region16: #{matmul_fedro_forward.1} parent=1 // pred_region
      %s31 = ssub.s32 4096, 4096
      %32 = vsyncadd [#allocation5], %s31
      %s33 = sshll.u32 [#allocation4], 4
      %s34 = int_to_ptr.vmem [resolvable:$true] %s33
      %39 = dma.hbm_to_vmem [thread:$0]  %s3, 4096, %s34, [#allocation5], 128, 128, 8
    $region17: #{matmul_fedro_forward.1} parent=1 // pred_fallthru
      _
    // Predicated region
    $region18: #{matmul_fedro_forward.1} parent=1 // pred_check
      _
    $region19: #{matmul_fedro_forward.1} parent=1 // pred_check_branch
      %41 = sbr.rel (0) target = $region21
    $region20: #{matmul_fedro_forward.1} parent=1 // pred_region
      _
    $region21: #{matmul_fedro_forward.1} parent=1 // pred_fallthru
      _
    // Predicated region
    $region22: #{matmul_fedro_forward.1} parent=1 // pred_check
      _
    $region23: #{matmul_fedro_forward.1} parent=1 // pred_check_branch
      %43 = sbr.rel (0) target = $region25
    $region24: #{matmul_fedro_forward.1} parent=1 // pred_region
      %44 = dma.done [#allocation3], 4096
    $region25: #{matmul_fedro_forward.1} parent=1 // pred_fallthru
      _
    // Predicated region
    $region26: #{matmul_fedro_forward.1} parent=1 // pred_check
      _
    $region27: #{matmul_fedro_forward.1} parent=1 // pred_check_branch
      %46 = sbr.rel (0) target = $region29
    $region28: #{matmul_fedro_forward.1} parent=1 // pred_region
      %47 = dma.done [#allocation5], 4096
    $region29: #{matmul_fedro_forward.1} parent=1 // pred_fallthru
      _
    %v49 = vld [vmem:[%s0] sm:$0xff]
    %v50 = vld [vmem:[#allocation2] sm:$0xff]
    %v51 = vld [vmem:[#allocation2 + $0x8] sm:$0xff]
    %v52 = vld [vmem:[#allocation2 + $0x10] sm:$0xff]
    %v53 = vld [vmem:[#allocation2 + $0x18] sm:$0xff]
    %v54 = vld [vmem:[#allocation2 + $0x20] sm:$0xff]
    %v55 = vld [vmem:[#allocation2 + $0x28] sm:$0xff]
    %v56 = vld [vmem:[#allocation2 + $0x30] sm:$0xff]
    %v57 = vld [vmem:[#allocation2 + $0x38] sm:$0xff]
    %v58 = vld [vmem:[#allocation2 + $0x40] sm:$0xff]
    %v59 = vld [vmem:[#allocation2 + $0x48] sm:$0xff]
    %v60 = vld [vmem:[#allocation2 + $0x50] sm:$0xff]
    %v61 = vld [vmem:[#allocation2 + $0x58] sm:$0xff]
    %v62 = vld [vmem:[#allocation2 + $0x60] sm:$0xff]
    %v63 = vld [vmem:[#allocation2 + $0x68] sm:$0xff]
    %v64 = vld [vmem:[#allocation2 + $0x70] sm:$0xff]
    %v65 = vld [vmem:[#allocation2 + $0x78] sm:$0xff]
    %v66 = vld [vmem:[#allocation2 + $0x80] sm:$0xff]
    %v67 = vld [vmem:[#allocation2 + $0x88] sm:$0xff]
    %v68 = vld [vmem:[#allocation2 + $0x90] sm:$0xff]
    %v69 = vld [vmem:[#allocation2 + $0x98] sm:$0xff]
    %v70 = vld [vmem:[#allocation2 + $0xa0] sm:$0xff]
    %v71 = vld [vmem:[#allocation2 + $0xa8] sm:$0xff]
    %v72 = vld [vmem:[#allocation2 + $0xb0] sm:$0xff]
    %v73 = vld [vmem:[#allocation2 + $0xb8] sm:$0xff]
    %v74 = vld [vmem:[#allocation2 + $0xc0] sm:$0xff]
    %v75 = vld [vmem:[#allocation2 + $0xc8] sm:$0xff]
    %v76 = vld [vmem:[#allocation2 + $0xd0] sm:$0xff]
    %v77 = vld [vmem:[#allocation2 + $0xd8] sm:$0xff]
    %v78 = vld [vmem:[#allocation2 + $0xe0] sm:$0xff]
    %v79 = vld [vmem:[#allocation2 + $0xe8] sm:$0xff]
    %v80 = vld [vmem:[#allocation2 + $0xf0] sm:$0xff]
    %v81 = vld [vmem:[#allocation2 + $0xf8] sm:$0xff]
    %v83 = vunpack.c.l.b16 %v49
    %v84 = vunpack.c.h.b16 %v49
    %v85 = vpack.c.b16 %v83, %v83
    %v86 = vpack.c.b16 %v84, %v84
    %v121 = vunpack.c.l.b16 %v50
    %v122 = vunpack.c.h.b16 %v50
    %v123 = vunpack.c.l.b16 %v51
    %v124 = vunpack.c.h.b16 %v51
    %v125 = vunpack.c.l.b16 %v52
    %v126 = vunpack.c.h.b16 %v52
    %v127 = vunpack.c.l.b16 %v53
    %v128 = vunpack.c.h.b16 %v53
    %v129 = vunpack.c.l.b16 %v54
    %v130 = vunpack.c.h.b16 %v54
    %v131 = vunpack.c.l.b16 %v55
    %v132 = vunpack.c.h.b16 %v55
    %v133 = vunpack.c.l.b16 %v56
    %v134 = vunpack.c.h.b16 %v56
    %v135 = vunpack.c.l.b16 %v57
    %v136 = vunpack.c.h.b16 %v57
    %v137 = vunpack.c.l.b16 %v58
    %v138 = vunpack.c.h.b16 %v58
    %v139 = vunpack.c.l.b16 %v59
    %v140 = vunpack.c.h.b16 %v59
    %v141 = vunpack.c.l.b16 %v60
    %v142 = vunpack.c.h.b16 %v60
    %v143 = vunpack.c.l.b16 %v61
    %v144 = vunpack.c.h.b16 %v61
    %v145 = vunpack.c.l.b16 %v62
    %v146 = vunpack.c.h.b16 %v62
    %v147 = vunpack.c.l.b16 %v63
    %v148 = vunpack.c.h.b16 %v63
    %v149 = vunpack.c.l.b16 %v64
    %v150 = vunpack.c.h.b16 %v64
    %v151 = vunpack.c.l.b16 %v65
    %v152 = vunpack.c.h.b16 %v65
    %v153 = vunpack.c.l.b16 %v66
    %v154 = vunpack.c.h.b16 %v66
    %v155 = vunpack.c.l.b16 %v67
    %v156 = vunpack.c.h.b16 %v67
    %v157 = vunpack.c.l.b16 %v68
    %v158 = vunpack.c.h.b16 %v68
    %v159 = vunpack.c.l.b16 %v69
    %v160 = vunpack.c.h.b16 %v69
    %v161 = vunpack.c.l.b16 %v70
    %v162 = vunpack.c.h.b16 %v70
    %v163 = vunpack.c.l.b16 %v71
    %v164 = vunpack.c.h.b16 %v71
    %v165 = vunpack.c.l.b16 %v72
    %v166 = vunpack.c.h.b16 %v72
    %v167 = vunpack.c.l.b16 %v73
    %v168 = vunpack.c.h.b16 %v73
    %v169 = vunpack.c.l.b16 %v74
    %v170 = vunpack.c.h.b16 %v74
    %v171 = vunpack.c.l.b16 %v75
    %v172 = vunpack.c.h.b16 %v75
    %v173 = vunpack.c.l.b16 %v76
    %v174 = vunpack.c.h.b16 %v76
    %v175 = vunpack.c.l.b16 %v77
    %v176 = vunpack.c.h.b16 %v77
    %v177 = vunpack.c.l.b16 %v78
    %v178 = vunpack.c.h.b16 %v78
    %v179 = vunpack.c.l.b16 %v79
    %v180 = vunpack.c.h.b16 %v79
    %v181 = vunpack.c.l.b16 %v80
    %v182 = vunpack.c.h.b16 %v80
    %v183 = vunpack.c.l.b16 %v81
    %v184 = vunpack.c.h.b16 %v81
    %v185 = vpack.c.b16 %v123, %v121
    %v186 = vpack.c.b16 %v124, %v122
    %v187 = vpack.c.b16 %v127, %v125
    %v188 = vpack.c.b16 %v128, %v126
    %v189 = vpack.c.b16 %v131, %v129
    %v190 = vpack.c.b16 %v132, %v130
    %v191 = vpack.c.b16 %v135, %v133
    %v192 = vpack.c.b16 %v136, %v134
    %v193 = vpack.c.b16 %v139, %v137
    %v194 = vpack.c.b16 %v140, %v138
    %v195 = vpack.c.b16 %v143, %v141
    %v196 = vpack.c.b16 %v144, %v142
    %v197 = vpack.c.b16 %v147, %v145
    %v198 = vpack.c.b16 %v148, %v146
    %v199 = vpack.c.b16 %v151, %v149
    %v200 = vpack.c.b16 %v152, %v150
    %v201 = vpack.c.b16 %v155, %v153
    %v202 = vpack.c.b16 %v156, %v154
    %v203 = vpack.c.b16 %v159, %v157
    %v204 = vpack.c.b16 %v160, %v158
    %v205 = vpack.c.b16 %v163, %v161
    %v206 = vpack.c.b16 %v164, %v162
    %v207 = vpack.c.b16 %v167, %v165
    %v208 = vpack.c.b16 %v168, %v166
    %v209 = vpack.c.b16 %v171, %v169
    %v210 = vpack.c.b16 %v172, %v170
    %v211 = vpack.c.b16 %v175, %v173
    %v212 = vpack.c.b16 %v176, %v174
    %v213 = vpack.c.b16 %v179, %v177
    %v214 = vpack.c.b16 %v180, %v178
    %v215 = vpack.c.b16 %v183, %v181
    %v216 = vpack.c.b16 %v184, %v182
    %249 = vmatprep.subr.bf16.mxu0 %v186
    %250 = vmatpush1.bf16.msra.mxu0 %v185
    %251 = vmatprep.subr.bf16.mxu0 %v188
    %252 = vmatpush1.bf16.msra.mxu0 %v187
    %253 = vmatprep.subr.bf16.mxu0 %v190
    %254 = vmatpush1.bf16.msra.mxu0 %v189
    %255 = vmatprep.subr.bf16.mxu0 %v192
    %256 = vmatpush1.bf16.msra.mxu0 %v191
    %257 = vmatprep.subr.bf16.mxu0 %v194
    %258 = vmatpush1.bf16.msra.mxu0 %v193
    %259 = vmatprep.subr.bf16.mxu0 %v196
    %260 = vmatpush1.bf16.msra.mxu0 %v195
    %261 = vmatprep.subr.bf16.mxu0 %v198
    %262 = vmatpush1.bf16.msra.mxu0 %v197
    %263 = vmatprep.subr.bf16.mxu0 %v200
    %264 = vmatpush1.bf16.msra.mxu0 %v199
    %265 = vmatprep.subr.bf16.mxu0 %v202
    %266 = vmatpush1.bf16.msra.mxu0 %v201
    %267 = vmatprep.subr.bf16.mxu0 %v204
    %268 = vmatpush1.bf16.msra.mxu0 %v203
    %269 = vmatprep.subr.bf16.mxu0 %v206
    %270 = vmatpush1.bf16.msra.mxu0 %v205
    %271 = vmatprep.subr.bf16.mxu0 %v208
    %272 = vmatpush1.bf16.msra.mxu0 %v207
    %273 = vmatprep.subr.bf16.mxu0 %v210
    %274 = vmatpush1.bf16.msra.mxu0 %v209
    %275 = vmatprep.subr.bf16.mxu0 %v212
    %276 = vmatpush1.bf16.msra.mxu0 %v211
    %277 = vmatprep.subr.bf16.mxu0 %v214
    %278 = vmatpush1.bf16.msra.mxu0 %v213
    %279 = vmatprep.subr.bf16.mxu0 %v216
    %280 = vmatpush1.bf16.msra.mxu0 %v215
    %281 = vmatprep.mubr.bf16.mxu0 %v86
    %282 = vmatmul.mubr.bf16.gmra.mrb[0].mxu0 %v85
    %v283 = vpop.f32.mrb[0].mxu0
    %v284 = vadd.f32 0.0, %v283
    %v285 = vpop.f32.mrb[0].mxu0
    %v286 = vadd.f32 0.0, %v285
    %v287 = vpop.f32.mrb[0].mxu0
    %v288 = vpop.f32.mrb[0].mxu0
    %289 = vdwg.mxu0
    %v290 = vld [vmem:[%s1] sm:$0xff]
    %v291 = vld [vmem:[#allocation4] sm:$0xff]
    %v292 = vld [vmem:[#allocation4 + $0x8] sm:$0xff]
    %v293 = vld [vmem:[#allocation4 + $0x10] sm:$0xff]
    %v294 = vld [vmem:[#allocation4 + $0x18] sm:$0xff]
    %v295 = vld [vmem:[#allocation4 + $0x20] sm:$0xff]
    %v296 = vld [vmem:[#allocation4 + $0x28] sm:$0xff]
    %v297 = vld [vmem:[#allocation4 + $0x30] sm:$0xff]
    %v298 = vld [vmem:[#allocation4 + $0x38] sm:$0xff]
    %v299 = vld [vmem:[#allocation4 + $0x40] sm:$0xff]
    %v300 = vld [vmem:[#allocation4 + $0x48] sm:$0xff]
    %v301 = vld [vmem:[#allocation4 + $0x50] sm:$0xff]
    %v302 = vld [vmem:[#allocation4 + $0x58] sm:$0xff]
    %v303 = vld [vmem:[#allocation4 + $0x60] sm:$0xff]
    %v304 = vld [vmem:[#allocation4 + $0x68] sm:$0xff]
    %v305 = vld [vmem:[#allocation4 + $0x70] sm:$0xff]
    %v306 = vld [vmem:[#allocation4 + $0x78] sm:$0xff]
    %v307 = vld [vmem:[#allocation4 + $0x80] sm:$0xff]
    %v308 = vld [vmem:[#allocation4 + $0x88] sm:$0xff]
    %v309 = vld [vmem:[#allocation4 + $0x90] sm:$0xff]
    %v310 = vld [vmem:[#allocation4 + $0x98] sm:$0xff]
    %v311 = vld [vmem:[#allocation4 + $0xa0] sm:$0xff]
    %v312 = vld [vmem:[#allocation4 + $0xa8] sm:$0xff]
    %v313 = vld [vmem:[#allocation4 + $0xb0] sm:$0xff]
    %v314 = vld [vmem:[#allocation4 + $0xb8] sm:$0xff]
    %v315 = vld [vmem:[#allocation4 + $0xc0] sm:$0xff]
    %v316 = vld [vmem:[#allocation4 + $0xc8] sm:$0xff]
    %v317 = vld [vmem:[#allocation4 + $0xd0] sm:$0xff]
    %v318 = vld [vmem:[#allocation4 + $0xd8] sm:$0xff]
    %v319 = vld [vmem:[#allocation4 + $0xe0] sm:$0xff]
    %v320 = vld [vmem:[#allocation4 + $0xe8] sm:$0xff]
    %v321 = vld [vmem:[#allocation4 + $0xf0] sm:$0xff]
    %v322 = vld [vmem:[#allocation4 + $0xf8] sm:$0xff]
    %v324 = vunpack.c.l.b16 %v290
    %v325 = vunpack.c.h.b16 %v290
    %v326 = vpack.c.b16 %v324, %v324
    %v327 = vpack.c.b16 %v325, %v325
    %v362 = vunpack.c.l.b16 %v291
    %v363 = vunpack.c.h.b16 %v291
    %v364 = vunpack.c.l.b16 %v292
    %v365 = vunpack.c.h.b16 %v292
    %v366 = vunpack.c.l.b16 %v293
    %v367 = vunpack.c.h.b16 %v293
    %v368 = vunpack.c.l.b16 %v294
    %v369 = vunpack.c.h.b16 %v294
    %v370 = vunpack.c.l.b16 %v295
    %v371 = vunpack.c.h.b16 %v295
    %v372 = vunpack.c.l.b16 %v296
    %v373 = vunpack.c.h.b16 %v296
    %v374 = vunpack.c.l.b16 %v297
    %v375 = vunpack.c.h.b16 %v297
    %v376 = vunpack.c.l.b16 %v298
    %v377 = vunpack.c.h.b16 %v298
    %v378 = vunpack.c.l.b16 %v299
    %v379 = vunpack.c.h.b16 %v299
    %v380 = vunpack.c.l.b16 %v300
    %v381 = vunpack.c.h.b16 %v300
    %v382 = vunpack.c.l.b16 %v301
    %v383 = vunpack.c.h.b16 %v301
    %v384 = vunpack.c.l.b16 %v302
    %v385 = vunpack.c.h.b16 %v302
    %v386 = vunpack.c.l.b16 %v303
    %v387 = vunpack.c.h.b16 %v303
    %v388 = vunpack.c.l.b16 %v304
    %v389 = vunpack.c.h.b16 %v304
    %v390 = vunpack.c.l.b16 %v305
    %v391 = vunpack.c.h.b16 %v305
    %v392 = vunpack.c.l.b16 %v306
    %v393 = vunpack.c.h.b16 %v306
    %v394 = vunpack.c.l.b16 %v307
    %v395 = vunpack.c.h.b16 %v307
    %v396 = vunpack.c.l.b16 %v308
    %v397 = vunpack.c.h.b16 %v308
    %v398 = vunpack.c.l.b16 %v309
    %v399 = vunpack.c.h.b16 %v309
    %v400 = vunpack.c.l.b16 %v310
    %v401 = vunpack.c.h.b16 %v310
    %v402 = vunpack.c.l.b16 %v311
    %v403 = vunpack.c.h.b16 %v311
    %v404 = vunpack.c.l.b16 %v312
    %v405 = vunpack.c.h.b16 %v312
    %v406 = vunpack.c.l.b16 %v313
    %v407 = vunpack.c.h.b16 %v313
    %v408 = vunpack.c.l.b16 %v314
    %v409 = vunpack.c.h.b16 %v314
    %v410 = vunpack.c.l.b16 %v315
    %v411 = vunpack.c.h.b16 %v315
    %v412 = vunpack.c.l.b16 %v316
    %v413 = vunpack.c.h.b16 %v316
    %v414 = vunpack.c.l.b16 %v317
    %v415 = vunpack.c.h.b16 %v317
    %v416 = vunpack.c.l.b16 %v318
    %v417 = vunpack.c.h.b16 %v318
    %v418 = vunpack.c.l.b16 %v319
    %v419 = vunpack.c.h.b16 %v319
    %v420 = vunpack.c.l.b16 %v320
    %v421 = vunpack.c.h.b16 %v320
    %v422 = vunpack.c.l.b16 %v321
    %v423 = vunpack.c.h.b16 %v321
    %v424 = vunpack.c.l.b16 %v322
    %v425 = vunpack.c.h.b16 %v322
    %v426 = vpack.c.b16 %v364, %v362
    %v427 = vpack.c.b16 %v365, %v363
    %v428 = vpack.c.b16 %v368, %v366
    %v429 = vpack.c.b16 %v369, %v367
    %v430 = vpack.c.b16 %v372, %v370
    %v431 = vpack.c.b16 %v373, %v371
    %v432 = vpack.c.b16 %v376, %v374
    %v433 = vpack.c.b16 %v377, %v375
    %v434 = vpack.c.b16 %v380, %v378
    %v435 = vpack.c.b16 %v381, %v379
    %v436 = vpack.c.b16 %v384, %v382
    %v437 = vpack.c.b16 %v385, %v383
    %v438 = vpack.c.b16 %v388, %v386
    %v439 = vpack.c.b16 %v389, %v387
    %v440 = vpack.c.b16 %v392, %v390
    %v441 = vpack.c.b16 %v393, %v391
    %v442 = vpack.c.b16 %v396, %v394
    %v443 = vpack.c.b16 %v397, %v395
    %v444 = vpack.c.b16 %v400, %v398
    %v445 = vpack.c.b16 %v401, %v399
    %v446 = vpack.c.b16 %v404, %v402
    %v447 = vpack.c.b16 %v405, %v403
    %v448 = vpack.c.b16 %v408, %v406
    %v449 = vpack.c.b16 %v409, %v407
    %v450 = vpack.c.b16 %v412, %v410
    %v451 = vpack.c.b16 %v413, %v411
    %v452 = vpack.c.b16 %v416, %v414
    %v453 = vpack.c.b16 %v417, %v415
    %v454 = vpack.c.b16 %v420, %v418
    %v455 = vpack.c.b16 %v421, %v419
    %v456 = vpack.c.b16 %v424, %v422
    %v457 = vpack.c.b16 %v425, %v423
    %490 = vmatprep.subr.bf16.mxu0 %v427
    %491 = vmatpush1.bf16.msra.mxu0 %v426
    %492 = vmatprep.subr.bf16.mxu0 %v429
    %493 = vmatpush1.bf16.msra.mxu0 %v428
    %494 = vmatprep.subr.bf16.mxu0 %v431
    %495 = vmatpush1.bf16.msra.mxu0 %v430
    %496 = vmatprep.subr.bf16.mxu0 %v433
    %497 = vmatpush1.bf16.msra.mxu0 %v432
    %498 = vmatprep.subr.bf16.mxu0 %v435
    %499 = vmatpush1.bf16.msra.mxu0 %v434
    %500 = vmatprep.subr.bf16.mxu0 %v437
    %501 = vmatpush1.bf16.msra.mxu0 %v436
    %502 = vmatprep.subr.bf16.mxu0 %v439
    %503 = vmatpush1.bf16.msra.mxu0 %v438
    %504 = vmatprep.subr.bf16.mxu0 %v441
    %505 = vmatpush1.bf16.msra.mxu0 %v440
    %506 = vmatprep.subr.bf16.mxu0 %v443
    %507 = vmatpush1.bf16.msra.mxu0 %v442
    %508 = vmatprep.subr.bf16.mxu0 %v445
    %509 = vmatpush1.bf16.msra.mxu0 %v444
    %510 = vmatprep.subr.bf16.mxu0 %v447
    %511 = vmatpush1.bf16.msra.mxu0 %v446
    %512 = vmatprep.subr.bf16.mxu0 %v449
    %513 = vmatpush1.bf16.msra.mxu0 %v448
    %514 = vmatprep.subr.bf16.mxu0 %v451
    %515 = vmatpush1.bf16.msra.mxu0 %v450
    %516 = vmatprep.subr.bf16.mxu0 %v453
    %517 = vmatpush1.bf16.msra.mxu0 %v452
    %518 = vmatprep.subr.bf16.mxu0 %v455
    %519 = vmatpush1.bf16.msra.mxu0 %v454
    %520 = vmatprep.subr.bf16.mxu0 %v457
    %521 = vmatpush1.bf16.msra.mxu0 %v456
    %522 = vmatprep.mubr.bf16.mxu0 %v327
    %523 = vmatmul.mubr.bf16.gmra.mrb[0].mxu0 %v326
    %v524 = vpop.f32.mrb[0].mxu0
    %v525 = vadd.f32 0.0, %v524
    %v526 = vpop.f32.mrb[0].mxu0
    %v527 = vadd.f32 0.0, %v526
    %v528 = vpop.f32.mrb[0].mxu0
    %v529 = vpop.f32.mrb[0].mxu0
    %530 = vdwg.mxu0
    %v531 = vmul.f32 %v284, %v525
    %v532 = vmul.f32 %v286, %v527
    %v533 = vpack.c.bf16 %v531, %v531
    %v534 = vpack.c.bf16 %v532, %v532
    %v535 = vld [vmem:[%s4] sm:$0xf]
    %v536 = vld [vmem:[%s4 + $0x4] sm:$0xf]
    %v537 = vld [vmem:[%s4 + $0x8] sm:$0xf]
    %v538 = vld [vmem:[%s4 + $0xc] sm:$0xf]
    %v539 = vld [vmem:[%s4 + $0x10] sm:$0xf]
    %v540 = vld [vmem:[%s4 + $0x14] sm:$0xf]
    %v541 = vld [vmem:[%s4 + $0x18] sm:$0xf]
    %v542 = vld [vmem:[%s4 + $0x1c] sm:$0xf]
    %v543 = vld [vmem:[%s4 + $0x20] sm:$0xf]
    %v544 = vld [vmem:[%s4 + $0x24] sm:$0xf]
    %v545 = vld [vmem:[%s4 + $0x28] sm:$0xf]
    %v546 = vld [vmem:[%s4 + $0x2c] sm:$0xf]
    %v547 = vld [vmem:[%s4 + $0x30] sm:$0xf]
    %v548 = vld [vmem:[%s4 + $0x34] sm:$0xf]
    %v549 = vld [vmem:[%s4 + $0x38] sm:$0xf]
    %v550 = vld [vmem:[%s4 + $0x3c] sm:$0xf]
    %v551 = vld [vmem:[%s4 + $0x40] sm:$0xf]
    %v552 = vld [vmem:[%s4 + $0x44] sm:$0xf]
    %v553 = vld [vmem:[%s4 + $0x48] sm:$0xf]
    %v554 = vld [vmem:[%s4 + $0x4c] sm:$0xf]
    %v555 = vld [vmem:[%s4 + $0x50] sm:$0xf]
    %v556 = vld [vmem:[%s4 + $0x54] sm:$0xf]
    %v557 = vld [vmem:[%s4 + $0x58] sm:$0xf]
    %v558 = vld [vmem:[%s4 + $0x5c] sm:$0xf]
    %v559 = vld [vmem:[%s4 + $0x60] sm:$0xf]
    %v560 = vld [vmem:[%s4 + $0x64] sm:$0xf]
    %v561 = vld [vmem:[%s4 + $0x68] sm:$0xf]
    %v562 = vld [vmem:[%s4 + $0x6c] sm:$0xf]
    %v563 = vld [vmem:[%s4 + $0x70] sm:$0xf]
    %v564 = vld [vmem:[%s4 + $0x74] sm:$0xf]
    %v565 = vld [vmem:[%s4 + $0x78] sm:$0xf]
    %v566 = vld [vmem:[%s4 + $0x7c] sm:$0xf]
    %v599 = vunpack.c.l.b16 %v535
    %v600 = vunpack.c.l.b16 %v536
    %v601 = vunpack.c.l.b16 %v537
    %v602 = vunpack.c.l.b16 %v538
    %v603 = vunpack.c.l.b16 %v539
    %v604 = vunpack.c.l.b16 %v540
    %v605 = vunpack.c.l.b16 %v541
    %v606 = vunpack.c.l.b16 %v542
    %v607 = vunpack.c.l.b16 %v543
    %v608 = vunpack.c.l.b16 %v544
    %v609 = vunpack.c.l.b16 %v545
    %v610 = vunpack.c.l.b16 %v546
    %v611 = vunpack.c.l.b16 %v547
    %v612 = vunpack.c.l.b16 %v548
    %v613 = vunpack.c.l.b16 %v549
    %v614 = vunpack.c.l.b16 %v550
    %v615 = vunpack.c.l.b16 %v551
    %v616 = vunpack.c.l.b16 %v552
    %v617 = vunpack.c.l.b16 %v553
    %v618 = vunpack.c.l.b16 %v554
    %v619 = vunpack.c.l.b16 %v555
    %v620 = vunpack.c.l.b16 %v556
    %v621 = vunpack.c.l.b16 %v557
    %v622 = vunpack.c.l.b16 %v558
    %v623 = vunpack.c.l.b16 %v559
    %v624 = vunpack.c.l.b16 %v560
    %v625 = vunpack.c.l.b16 %v561
    %v626 = vunpack.c.l.b16 %v562
    %v627 = vunpack.c.l.b16 %v563
    %v628 = vunpack.c.l.b16 %v564
    %v629 = vunpack.c.l.b16 %v565
    %v630 = vunpack.c.l.b16 %v566
    %v631 = vpack.c.b16 %v600, %v599
    %v632 = vpack.c.b16 %v602, %v601
    %v633 = vpack.c.b16 %v604, %v603
    %v634 = vpack.c.b16 %v606, %v605
    %v635 = vpack.c.b16 %v608, %v607
    %v636 = vpack.c.b16 %v610, %v609
    %v637 = vpack.c.b16 %v612, %v611
    %v638 = vpack.c.b16 %v614, %v613
    %v639 = vpack.c.b16 %v616, %v615
    %v640 = vpack.c.b16 %v618, %v617
    %v641 = vpack.c.b16 %v620, %v619
    %v642 = vpack.c.b16 %v622, %v621
    %v643 = vpack.c.b16 %v624, %v623
    %v644 = vpack.c.b16 %v626, %v625
    %v645 = vpack.c.b16 %v628, %v627
    %v646 = vpack.c.b16 %v630, %v629
    %663 = vmatprep.subr.bf16.mxu0 0
    %664 = vmatpush1.bf16.msra.mxu0 %v631
    %665 = vmatprep.subr.bf16.mxu0 0
    %666 = vmatpush1.bf16.msra.mxu0 %v632
    %667 = vmatprep.subr.bf16.mxu0 0
    %668 = vmatpush1.bf16.msra.mxu0 %v633
    %669 = vmatprep.subr.bf16.mxu0 0
    %670 = vmatpush1.bf16.msra.mxu0 %v634
    %671 = vmatprep.subr.bf16.mxu0 0
    %672 = vmatpush1.bf16.msra.mxu0 %v635
    %673 = vmatprep.subr.bf16.mxu0 0
    %674 = vmatpush1.bf16.msra.mxu0 %v636
    %675 = vmatprep.subr.bf16.mxu0 0
    %676 = vmatpush1.bf16.msra.mxu0 %v637
    %677 = vmatprep.subr.bf16.mxu0 0
    %678 = vmatpush1.bf16.msra.mxu0 %v638
    %679 = vmatprep.subr.bf16.mxu0 0
    %680 = vmatpush1.bf16.msra.mxu0 %v639
    %681 = vmatprep.subr.bf16.mxu0 0
    %682 = vmatpush1.bf16.msra.mxu0 %v640
    %683 = vmatprep.subr.bf16.mxu0 0
    %684 = vmatpush1.bf16.msra.mxu0 %v641
    %685 = vmatprep.subr.bf16.mxu0 0
    %686 = vmatpush1.bf16.msra.mxu0 %v642
    %687 = vmatprep.subr.bf16.mxu0 0
    %688 = vmatpush1.bf16.msra.mxu0 %v643
    %689 = vmatprep.subr.bf16.mxu0 0
    %690 = vmatpush1.bf16.msra.mxu0 %v644
    %691 = vmatprep.subr.bf16.mxu0 0
    %692 = vmatpush1.bf16.msra.mxu0 %v645
    %693 = vmatprep.subr.bf16.mxu0 0
    %694 = vmatpush1.bf16.msra.mxu0 %v646
    %695 = vmatprep.mubr.bf16.mxu0 %v534
    %696 = vmatmul.mubr.bf16.gmra.mrb[0].mxu0 %v533
    %v697 = vpop.f32.mrb[0].mxu0
    %v698 = vadd.f32 0.0, %v697
    %v699 = vpop.f32.mrb[0].mxu0
    %v700 = vpop.f32.mrb[0].mxu0
    %v701 = vpop.f32.mrb[0].mxu0
    %702 = vdwg.mxu0
    %703 = vst [vmem:[%s5] sm:$0xff] %v698
    // Predicated region
    $region30: #{matmul_fedro_forward.1} parent=1 // pred_check
      _
    $region31: #{matmul_fedro_forward.1} parent=1 // pred_check_branch
      %705 = sbr.rel (0) target = $region33
    $region32: #{matmul_fedro_forward.1} parent=1 // pred_region
      _
    $region33: #{matmul_fedro_forward.1} parent=1 // pred_fallthru
      _
    // Predicated region
    $region34: #{matmul_fedro_forward.1} parent=1 // pred_check
      _
    $region35: #{matmul_fedro_forward.1} parent=1 // pred_check_branch
      %707 = sbr.rel (0) target = $region37
    $region36: #{matmul_fedro_forward.1} parent=1 // pred_region
      _
    $region37: #{matmul_fedro_forward.1} parent=1 // pred_fallthru
      _
    %708 = vsyncpa [#allocation3], 1
    %709 = vsyncpa [#allocation5], 1

</llo_original>
